<compile_context>
chip_gen: v7x
topology: tpu7x:2x2x1
jax: 0.10.0
libtpu: 0.0.40
codegen_flags: <defaults>
</compile_context>

<pallas_src>
import jax
import jax.numpy as jnp
import numpy as np
from jax.experimental import pallas as pl
from jax.experimental.pallas import tpu as pltpu

LANE = 128
ROW_TILE = 16          # bf16 packs 2 rows per sublane -> 16-row granularity
TILE_MAX = 2048        # max batch rows per grid step
D_IN, D_H1, D_H2, D_OUT = 512, 256, 128, 4


def _cdiv(a, b):
    return -(-a // b)


def _round_up(x, m):
    return _cdiv(x, m) * m


def head_kernel(x_ref, w0_ref, b0_ref, w1_ref, b1_ref, w2_ref, b2_ref, o_ref):
    # In-kernel f32 -> bf16 cast of the features (VPU work, hidden under the
    # HBM-bound DMA) instead of a separate XLA cast pass in the wrapper.
    x = x_ref[...].astype(jnp.bfloat16)
    # x = relu(resnet_model(x))   where resnet_model.fc = Linear(512, 256)
    h = jnp.dot(x, w0_ref[...], preferred_element_type=jnp.float32) + b0_ref[...]
    h = jnp.maximum(h, 0.0).astype(jnp.bfloat16)
    # x = relu(linear1(x))        Linear(256, 128)
    h = jnp.dot(h, w1_ref[...], preferred_element_type=jnp.float32) + b1_ref[...]
    h = jnp.maximum(h, 0.0).astype(jnp.bfloat16)
    # x = linear2(x)              Linear(128, 4): matmul against the
    # lane-padded (128, 128) w2 for a clean MXU op, then store only the 4
    # real columns (tiny masked store; writeback is 16 B/row instead of 512).
    y = jnp.dot(h, w2_ref[...], preferred_element_type=jnp.float32) + b2_ref[...]
    o_ref[...] = y[:, :D_OUT].astype(o_ref.dtype)


def prepare_params(params):
    """One-time weight prep (hoisted out of the per-call jit).

    Returns bf16 weights (f32 biases, added to the f32 accumulator); the last
    layer's weight/bias are lane-padded 4 -> 128 columns so its MXU matmul
    uses full columns.
    """
    (w0, b0), (w1, b1), (w2, b2) = params
    w2p = jnp.zeros((D_H2, LANE), jnp.bfloat16).at[:, :D_OUT].set(w2.astype(jnp.bfloat16))
    b2p = jnp.zeros((1, LANE), jnp.float32).at[:, :D_OUT].set(b2.astype(jnp.float32))
    return (
        w0.astype(jnp.bfloat16), b0.astype(jnp.float32),
        w1.astype(jnp.bfloat16), b1.astype(jnp.float32),
        w2p, b2p,
    )


def _choose_tile_b(B):
    """Pick the batch tile: as large as possible (<= TILE_MAX), 16-row
    aligned, sized to minimize boundary-pad waste, and giving large batches an
    even number (>= 2) of grid steps so the two v7x TensorCores load-balance."""
    n = _cdiv(B, TILE_MAX)
    if B > 2 * ROW_TILE:
        n = max(n, 2)
        if n % 2:
            n += 1
    return min(TILE_MAX, _round_up(_cdiv(B, n), ROW_TILE))


@jax.jit
def regression_head_pallas(feats, prepared):
    """feats: [B, 512] float32 penultimate-layer features -> [B, 4] float32."""
    w0, b0, w1, b1, w2p, b2p = prepared
    B = feats.shape[0]
    tile_b = _choose_tile_b(B)
    grid = (_cdiv(B, tile_b),)

    resident = lambda shape: pl.BlockSpec(shape, lambda i: (0, 0))  # VMEM-resident

    return pl.pallas_call(
        head_kernel,
        out_shape=jax.ShapeDtypeStruct((B, D_OUT), jnp.float32),
        grid=grid,
        in_specs=[
            pl.BlockSpec((tile_b, D_IN), lambda i: (i, 0)),  # f32 feats tile, pipelined
            resident((D_IN, D_H1)),                          # w0 (bf16)
            resident((1, D_H1)),                             # b0 (f32)
            resident((D_H1, D_H2)),                          # w1 (bf16)
            resident((1, D_H2)),                             # b1 (f32)
            resident((D_H2, LANE)),                          # w2 (bf16, lane-padded)
            resident((1, LANE)),                             # b2 (f32, lane-padded)
        ],
        out_specs=pl.BlockSpec((tile_b, D_OUT), lambda i: (i, 0)),
        compiler_params=pltpu.CompilerParams(
            dimension_semantics=("parallel",),   # shard batch tiles across TCs on v7x
            vmem_limit_bytes=32 * 1024 * 1024,   # raise v5e's 16 MiB default
        ),
    )(feats, w0, b0, w1, b1, w2p, b2p)


def init_linear(key, fan_in, fan_out):
    # PyTorch nn.Linear default init: U(-1/sqrt(fan_in), 1/sqrt(fan_in)).
    kw, kb = jax.random.split(key)
    bound = 1.0 / np.sqrt(fan_in)
    # stored as (in, out) so the kernel does x @ W + b
    w = jax.random.uniform(kw, (fan_in, fan_out), jnp.float32, -bound, bound)
    b = jax.random.uniform(kb, (1, fan_out), jnp.float32, -bound, bound)
    return w, b


def backbone_stub(x_nchw, proj):
    # TODO(synk): full ResNet conv trunk not implemented (it is an external,
    # frozen module passed into RegressionHead); stand-in = global avg pool
    # over H,W followed by a fixed deterministic projection C -> 512.
    pooled = jnp.mean(x_nchw, axis=(2, 3))          # [B, C]
    return pooled @ proj                            # [B, 512]


def reference_head(feats, params):
    (w0, b0), (w1, b1), (w2, b2) = params
    h = jnp.maximum(feats @ w0 + b0, 0.0)
    h = jnp.maximum(h @ w1 + b1, 0.0)
    return h @ w2 + b2


if __name__ == "__main__":
    key = jax.random.PRNGKey(0)
    k_x, k_proj, k0, k1, k2 = jax.random.split(key, 5)

    B, C, H, W = 2, 4, 16, 16
    x = jax.random.normal(k_x, (B, C, H, W), jnp.float32)           # NCHW input
    proj = jax.random.normal(k_proj, (C, 512), jnp.float32) * 0.1   # frozen stub weights

    params = (
        init_linear(k0, 512, 256),   # resnet_model.fc
        init_linear(k1, 256, 128),   # linear1
        init_linear(k2, 128, 4),     # linear2
    )
    prepared = jax.block_until_ready(prepare_params(params))  # one-time weight prep

    feats = backbone_stub(x, proj)                       # [B, 512] f32
    out = regression_head_pallas(feats, prepared)        # [B, 4]
    out = jax.block_until_ready(out)

    ref = jax.block_until_ready(reference_head(feats, params))
    assert out.shape == (B, 4)
    # bf16 matmul operands (f32 accumulation) -> loosened tolerance vs f32 ref.
    np.testing.assert_allclose(np.asarray(out), np.asarray(ref), rtol=2e-2, atol=5e-3)
    print("KERNEL_OK")
</pallas_src>

<mosaic_0001>
module attributes {stable_mosaic.version = 11 : i64} {
  func.func @head_kernel(%arg0: i32, %arg1: memref<16x512xf32, #tpu.memory_space<vmem>>, %arg2: memref<512x256xbf16, #tpu.memory_space<vmem>>, %arg3: memref<1x256xf32, #tpu.memory_space<vmem>>, %arg4: memref<256x128xbf16, #tpu.memory_space<vmem>>, %arg5: memref<1x128xf32, #tpu.memory_space<vmem>>, %arg6: memref<128x128xbf16, #tpu.memory_space<vmem>>, %arg7: memref<1x128xf32, #tpu.memory_space<vmem>>, %arg8: memref<16x4xf32, #tpu.memory_space<vmem>>) attributes {dimension_semantics = [#tpu.dimension_semantics<parallel>], iteration_bounds = array<i64: 1>, scalar_prefetch = 0 : i64, scratch_operands = 0 : i64, tpu.core_type = #tpu.core_type<tc>, window_params = [{transform_indices = @transform_0, window_bounds = array<i64: 16, 512>}, {pipeline_mode = #tpu.pipeline_mode<synchronous>, transform_indices = @transform_1, window_bounds = array<i64: 512, 256>}, {pipeline_mode = #tpu.pipeline_mode<synchronous>, transform_indices = @transform_2, window_bounds = array<i64: 1, 256>}, {pipeline_mode = #tpu.pipeline_mode<synchronous>, transform_indices = @transform_3, window_bounds = array<i64: 256, 128>}, {pipeline_mode = #tpu.pipeline_mode<synchronous>, transform_indices = @transform_4, window_bounds = array<i64: 1, 128>}, {pipeline_mode = #tpu.pipeline_mode<synchronous>, transform_indices = @transform_5, window_bounds = array<i64: 128, 128>}, {pipeline_mode = #tpu.pipeline_mode<synchronous>, transform_indices = @transform_6, window_bounds = array<i64: 1, 128>}, {transform_indices = @transform_7, window_bounds = array<i64: 16, 4>}]} {
    %c0 = arith.constant 0 : index
    %c0_0 = arith.constant 0 : index
    %0 = vector.load %arg1[%c0, %c0_0] : memref<16x512xf32, #tpu.memory_space<vmem>>, vector<16x512xf32>
    %1 = arith.truncf %0 : vector<16x512xf32> to vector<16x512xbf16>
    %c0_1 = arith.constant 0 : index
    %c0_2 = arith.constant 0 : index
    %2 = vector.load %arg2[%c0_1, %c0_2] : memref<512x256xbf16, #tpu.memory_space<vmem>>, vector<512x256xbf16>
    %cst = arith.constant dense<0.000000e+00> : vector<16x256xf32>
    %3 = tpu.matmul %1, %2, %cst {dimension_numbers = #tpu.dot_dimension_numbers<[1], [0], [0], [1], [0, 0, 1, 1], [], []>} : vector<16x512xbf16>, vector<512x256xbf16>, vector<16x256xf32> -> vector<16x256xf32>
    %c0_3 = arith.constant 0 : index
    %c0_4 = arith.constant 0 : index
    %4 = vector.load %arg3[%c0_3, %c0_4] : memref<1x256xf32, #tpu.memory_space<vmem>>, vector<1x256xf32>
    %5 = vector.broadcast %4 : vector<1x256xf32> to vector<16x256xf32>
    %6 = arith.addf %3, %5 : vector<16x256xf32>
    %cst_5 = arith.constant 0.000000e+00 : f32
    %7 = vector.broadcast %cst_5 : f32 to vector<16x256xf32>
    %8 = arith.maximumf %6, %7 : vector<16x256xf32>
    %9 = arith.truncf %8 : vector<16x256xf32> to vector<16x256xbf16>
    %c0_6 = arith.constant 0 : index
    %c0_7 = arith.constant 0 : index
    %10 = vector.load %arg4[%c0_6, %c0_7] : memref<256x128xbf16, #tpu.memory_space<vmem>>, vector<256x128xbf16>
    %cst_8 = arith.constant dense<0.000000e+00> : vector<16x128xf32>
    %11 = tpu.matmul %9, %10, %cst_8 {dimension_numbers = #tpu.dot_dimension_numbers<[1], [0], [0], [1], [0, 0, 1, 1], [], []>} : vector<16x256xbf16>, vector<256x128xbf16>, vector<16x128xf32> -> vector<16x128xf32>
    %c0_9 = arith.constant 0 : index
    %c0_10 = arith.constant 0 : index
    %12 = vector.load %arg5[%c0_9, %c0_10] : memref<1x128xf32, #tpu.memory_space<vmem>>, vector<1x128xf32>
    %13 = vector.broadcast %12 : vector<1x128xf32> to vector<16x128xf32>
    %14 = arith.addf %11, %13 : vector<16x128xf32>
    %cst_11 = arith.constant 0.000000e+00 : f32
    %15 = vector.broadcast %cst_11 : f32 to vector<16x128xf32>
    %16 = arith.maximumf %14, %15 : vector<16x128xf32>
    %17 = arith.truncf %16 : vector<16x128xf32> to vector<16x128xbf16>
    %c0_12 = arith.constant 0 : index
    %c0_13 = arith.constant 0 : index
    %18 = vector.load %arg6[%c0_12, %c0_13] : memref<128x128xbf16, #tpu.memory_space<vmem>>, vector<128x128xbf16>
    %cst_14 = arith.constant dense<0.000000e+00> : vector<16x128xf32>
    %19 = tpu.matmul %17, %18, %cst_14 {dimension_numbers = #tpu.dot_dimension_numbers<[1], [0], [0], [1], [0, 0, 1, 1], [], []>} : vector<16x128xbf16>, vector<128x128xbf16>, vector<16x128xf32> -> vector<16x128xf32>
    %c0_15 = arith.constant 0 : index
    %c0_16 = arith.constant 0 : index
    %20 = vector.load %arg7[%c0_15, %c0_16] : memref<1x128xf32, #tpu.memory_space<vmem>>, vector<1x128xf32>
    %21 = vector.broadcast %20 : vector<1x128xf32> to vector<16x128xf32>
    %22 = arith.addf %19, %21 : vector<16x128xf32>
    %23 = vector.extract_strided_slice %22 {offsets = [0, 0], sizes = [16, 4], strides = [1, 1]} : vector<16x128xf32> to vector<16x4xf32>
    %c0_17 = arith.constant 0 : index
    %c0_18 = arith.constant 0 : index
    %24 = vector.load %arg8[%c0_17, %c0_18] : memref<16x4xf32, #tpu.memory_space<vmem>>, vector<16x4xf32>
    tpu.vector_store %arg8[%c0_17, %c0_18], %23 {strides = array<i32>} : memref<16x4xf32, #tpu.memory_space<vmem>>, vector<16x4xf32>,
    return
  }
  func.func @transform_0(%arg0: i32) -> (i32, i32) {
    %c0_i32 = arith.constant 0 : i32
    %c0_i32_0 = arith.constant 0 : i32
    return %arg0, %c0_i32 : i32, i32
  }
  func.func @transform_1(%arg0: i32) -> (i32, i32) {
    %c0_i32 = arith.constant 0 : i32
    %c0_i32_0 = arith.constant 0 : i32
    %c0_i32_1 = arith.constant 0 : i32
    return %c0_i32, %c0_i32_0 : i32, i32
  }
  func.func @transform_2(%arg0: i32) -> (i32, i32) {
    %c0_i32 = arith.constant 0 : i32
    %c0_i32_0 = arith.constant 0 : i32
    %c0_i32_1 = arith.constant 0 : i32
    return %c0_i32, %c0_i32_0 : i32, i32
  }
  func.func @transform_3(%arg0: i32) -> (i32, i32) {
    %c0_i32 = arith.constant 0 : i32
    %c0_i32_0 = arith.constant 0 : i32
    %c0_i32_1 = arith.constant 0 : i32
    return %c0_i32, %c0_i32_0 : i32, i32
  }
  func.func @transform_4(%arg0: i32) -> (i32, i32) {
    %c0_i32 = arith.constant 0 : i32
    %c0_i32_0 = arith.constant 0 : i32
    %c0_i32_1 = arith.constant 0 : i32
    return %c0_i32, %c0_i32_0 : i32, i32
  }
  func.func @transform_5(%arg0: i32) -> (i32, i32) {
    %c0_i32 = arith.constant 0 : i32
    %c0_i32_0 = arith.constant 0 : i32
    %c0_i32_1 = arith.constant 0 : i32
    return %c0_i32, %c0_i32_0 : i32, i32
  }
  func.func @transform_6(%arg0: i32) -> (i32, i32) {
    %c0_i32 = arith.constant 0 : i32
    %c0_i32_0 = arith.constant 0 : i32
    %c0_i32_1 = arith.constant 0 : i32
    return %c0_i32, %c0_i32_0 : i32, i32
  }
  func.func @transform_7(%arg0: i32) -> (i32, i32) {
    %c0_i32 = arith.constant 0 : i32
    %c0_i32_0 = arith.constant 0 : i32
    return %arg0, %c0_i32 : i32, i32
  }
}

</mosaic_0001>

<llo_original>
// kernel: regression_head_pallas.1
$region0: #{regression_head_pallas.1}
  #allocation0 [shape = 'u32[]', space=smem, size = 0x4, offset = 0x4, fixed_abs, tag = 'smem constant byte address 0x4 - core index']
  #allocation1 [shape = 'u32[144,128]{1,0:T(1,128)}', space=vmem, size = 0x12000, scoped, tag = 'internal scratch']
  %s0 = inlined_call_operand.hbm [shape: f32[2,512], index: 0, kind: input, shape index: {}]
  %s1 = inlined_call_operand.hbm [shape: bf16[512,256], index: 1, kind: input, shape index: {}]
  %s2 = inlined_call_operand.vmem [shape: f32[1,256], index: 2, kind: input, shape index: {}]
  %s3 = inlined_call_operand.hbm [shape: bf16[256,128], index: 3, kind: input, shape index: {}]
  %s4 = inlined_call_operand.vmem [shape: f32[1,128], index: 4, kind: input, shape index: {}]
  %s5 = inlined_call_operand.hbm [shape: bf16[128,128], index: 5, kind: input, shape index: {}]
  %s6 = inlined_call_operand.vmem [shape: f32[1,128], index: 6, kind: input, shape index: {}]
  %s7 = inlined_call_operand.hbm [shape: f32[2,4], index: 7, kind: output, shape index: {}]
  %s8 = sld [smem:[#allocation0]]
  $region54: #{regression_head_pallas.1} parent=0
    _
  %s10 = ssub.s32 1, %s8
  %s11 = scalar_select 0, %s10, %s8
  $region1: #{regression_head_pallas.1} parent=0
    #allocation2 [shape = 'u8[32768]{0}', space=vmem, size = 0x8000, scoped, tag = 'input window, operand 0, single buffered']
    #allocation3 [shape = 's32[1]{0}', space=sflag, size = 0x4, scoped, tag = 'scoped memory for regression_head_pallas.1']
    #allocation4 [shape = 's32[1]{0}', space=sflag, size = 0x4, scoped, tag = 'scoped memory for regression_head_pallas.1']
    #allocation5 [shape = 'u8[262144]{0}', space=vmem, size = 0x40000, scoped, tag = 'input window, operand 1, single buffered']
    #allocation6 [shape = 's32[1]{0}', space=sflag, size = 0x4, scoped, tag = 'scoped memory for regression_head_pallas.1']
    #allocation7 [shape = 'u8[65536]{0}', space=vmem, size = 0x10000, scoped, tag = 'input window, operand 3, single buffered']
    #allocation8 [shape = 'u8[32768]{0}', space=vmem, size = 0x8000, scoped, tag = 'input window, operand 5, single buffered']
    #allocation9 [shape = 's32[1]{0}', space=sflag, size = 0x4, scoped, tag = 'scoped memory for regression_head_pallas.1']
    #allocation10 [shape = 'u8[8192]{0}', space=vmem, size = 0x2000, scoped, tag = 'output window, operand 0, single buffered']
    %12 = vsyncpa [#allocation3], 0
    %13 = vsyncpa [#allocation6], 0
    %14 = vsyncpa [#allocation9], 0
    %15 = vsyncpa [#allocation4], 0
    // Predicated region
    $region2: #{regression_head_pallas.1} parent=1 // pred_check
      _
    $region3: #{regression_head_pallas.1} parent=1 // pred_check_branch
      %17 = sbr.rel (0) target = $region5
    $region4: #{regression_head_pallas.1} parent=1 // pred_region
      %s19 = ssub.s32 1024, 128
      %20 = vsyncadd [#allocation3], %s19
      %s21 = sshll.u32 [#allocation2], 4
      %s22 = int_to_ptr.vmem [resolvable:$true] %s21
      %27 = dma.hbm_to_vmem [thread:$0]  %s0, 128, %s22, [#allocation3], 128, 128, 8
    $region5: #{regression_head_pallas.1} parent=1 // pred_fallthru
      _
    // Predicated region
    $region6: #{regression_head_pallas.1} parent=1 // pred_check
      _
    $region7: #{regression_head_pallas.1} parent=1 // pred_check_branch
      %29 = sbr.rel (0) target = $region9
    $region8: #{regression_head_pallas.1} parent=1 // pred_region
      %s31 = ssub.s32 8192, 8192
      %32 = vsyncadd [#allocation6], %s31
      %s33 = sshll.u32 [#allocation5], 4
      %s34 = int_to_ptr.vmem [resolvable:$true] %s33
      %39 = dma.hbm_to_vmem [thread:$0]  %s1, 8192, %s34, [#allocation6], 128, 128, 8
    $region9: #{regression_head_pallas.1} parent=1 // pred_fallthru
      _
    // Predicated region
    $region10: #{regression_head_pallas.1} parent=1 // pred_check
      _
    $region11: #{regression_head_pallas.1} parent=1 // pred_check_branch
      %41 = sbr.rel (0) target = $region13
    $region12: #{regression_head_pallas.1} parent=1 // pred_region
      _
    $region13: #{regression_head_pallas.1} parent=1 // pred_fallthru
      _
    // Predicated region
    $region14: #{regression_head_pallas.1} parent=1 // pred_check
      _
    $region15: #{regression_head_pallas.1} parent=1 // pred_check_branch
      %43 = sbr.rel (0) target = $region17
    $region16: #{regression_head_pallas.1} parent=1 // pred_region
      %s45 = ssub.s32 2048, 2048
      %46 = vsyncadd [#allocation6], %s45
      %s47 = sshll.u32 [#allocation7], 4
      %s48 = int_to_ptr.vmem [resolvable:$true] %s47
      %53 = dma.hbm_to_vmem [thread:$0]  %s3, 2048, %s48, [#allocation6], 64, 64, 4
    $region17: #{regression_head_pallas.1} parent=1 // pred_fallthru
      _
    // Predicated region
    $region18: #{regression_head_pallas.1} parent=1 // pred_check
      _
    $region19: #{regression_head_pallas.1} parent=1 // pred_check_branch
      %55 = sbr.rel (0) target = $region21
    $region20: #{regression_head_pallas.1} parent=1 // pred_region
      _
    $region21: #{regression_head_pallas.1} parent=1 // pred_fallthru
      _
    // Predicated region
    $region22: #{regression_head_pallas.1} parent=1 // pred_check
      _
    $region23: #{regression_head_pallas.1} parent=1 // pred_check_branch
      %57 = sbr.rel (0) target = $region25
    $region24: #{regression_head_pallas.1} parent=1 // pred_region
      %s59 = ssub.s32 1024, 1024
      %60 = vsyncadd [#allocation9], %s59
      %s61 = sshll.u32 [#allocation8], 4
      %s62 = int_to_ptr.vmem [resolvable:$true] %s61
      %67 = dma.hbm_to_vmem [thread:$0]  %s5, 1024, %s62, [#allocation9], 64, 64, 4
    $region25: #{regression_head_pallas.1} parent=1 // pred_fallthru
      _
    // Predicated region
    $region26: #{regression_head_pallas.1} parent=1 // pred_check
      _
    $region27: #{regression_head_pallas.1} parent=1 // pred_check_branch
      %69 = sbr.rel (0) target = $region29
    $region28: #{regression_head_pallas.1} parent=1 // pred_region
      _
    $region29: #{regression_head_pallas.1} parent=1 // pred_fallthru
      _
    // Predicated region
    $region30: #{regression_head_pallas.1} parent=1 // pred_check
      _
    $region31: #{regression_head_pallas.1} parent=1 // pred_check_branch
      %71 = sbr.rel (0) target = $region33
    $region32: #{regression_head_pallas.1} parent=1 // pred_region
      %72 = dma.done [#allocation3], 1024
    $region33: #{regression_head_pallas.1} parent=1 // pred_fallthru
      _
    // Predicated region
    $region34: #{regression_head_pallas.1} parent=1 // pred_check
      _
    $region35: #{regression_head_pallas.1} parent=1 // pred_check_branch
      %74 = sbr.rel (0) target = $region37
    $region36: #{regression_head_pallas.1} parent=1 // pred_region
      %75 = dma.done [#allocation6], 8192
    $region37: #{regression_head_pallas.1} parent=1 // pred_fallthru
      _
    // Predicated region
    $region38: #{regression_head_pallas.1} parent=1 // pred_check
      _
    $region39: #{regression_head_pallas.1} parent=1 // pred_check_branch
      %77 = sbr.rel (0) target = $region41
    $region40: #{regression_head_pallas.1} parent=1 // pred_region
      %78 = dma.done [#allocation6], 2048
    $region41: #{regression_head_pallas.1} parent=1 // pred_fallthru
      _
    // Predicated region
    $region42: #{regression_head_pallas.1} parent=1 // pred_check
      _
    $region43: #{regression_head_pallas.1} parent=1 // pred_check_branch
      %80 = sbr.rel (0) target = $region45
    $region44: #{regression_head_pallas.1} parent=1 // pred_region
      %81 = dma.done [#allocation9], 1024
    $region45: #{regression_head_pallas.1} parent=1 // pred_fallthru
      _
    %v83 = vld [vmem:[#allocation2] sm:$0xff]
    %v84 = vld [vmem:[#allocation2 + $0x8] sm:$0xff]
    %v85 = vld [vmem:[#allocation2 + $0x10] sm:$0xff]
    %v86 = vld [vmem:[#allocation2 + $0x18] sm:$0xff]
    %v87 = vld [vmem:[#allocation2 + $0x20] sm:$0xff]
    %v88 = vld [vmem:[#allocation2 + $0x28] sm:$0xff]
    %v89 = vld [vmem:[#allocation2 + $0x30] sm:$0xff]
    %v90 = vld [vmem:[#allocation2 + $0x38] sm:$0xff]
    %v99 = vcombine.low %v83, %v84
    %v100 = vcombine.high %v83, %v84
    %v101 = vcombine.low %v85, %v86
    %v102 = vcombine.high %v85, %v86
    %v104 = vunpack.c.l.s4 1983009808
    %v105 = vunpack.c.0.s8 %v104
    %v106 = vlaneseq
    %v107 = vshrl.u32 %v106, 7
    %v108 = vsub.s32 %v105, %v107
    %v109 = vrot.slane %v99, %v108
    %v111 = vunpack.c.l.s4 1983009808
    %v112 = vunpack.c.0.s8 %v111
    %v113 = vlaneseq
    %v114 = vshrl.u32 %v113, 7
    %v115 = vsub.s32 %v112, %v114
    %v116 = vrot.slane %v100, %v115
    %v118 = vunpack.c.l.s4 1983009808
    %v119 = vunpack.c.0.s8 %v118
    %v120 = vlaneseq
    %v121 = vshrl.u32 %v120, 7
    %v122 = vsub.s32 %v119, %v121
    %v123 = vrot.slane %v101, %v122
    %v125 = vunpack.c.l.s4 1983009808
    %v126 = vunpack.c.0.s8 %v125
    %v127 = vlaneseq
    %v128 = vshrl.u32 %v127, 7
    %v129 = vsub.s32 %v126, %v128
    %v130 = vrot.slane %v102, %v129
    %v131 = vcombine.low %v109, %v123
    %v132 = vcombine.high %v109, %v123
    %v133 = vcombine.low %v116, %v130
    %v134 = vcombine.high %v116, %v130
    %v135 = vcombine.low %v87, %v88
    %v136 = vcombine.high %v87, %v88
    %v137 = vcombine.low %v89, %v90
    %v138 = vcombine.high %v89, %v90
    %v140 = vunpack.c.l.s4 1983009808
    %v141 = vunpack.c.0.s8 %v140
    %v142 = vlaneseq
    %v143 = vshrl.u32 %v142, 7
    %v144 = vsub.s32 %v141, %v143
    %v145 = vrot.slane %v135, %v144
    %v147 = vunpack.c.l.s4 1983009808
    %v148 = vunpack.c.0.s8 %v147
    %v149 = vlaneseq
    %v150 = vshrl.u32 %v149, 7
    %v151 = vsub.s32 %v148, %v150
    %v152 = vrot.slane %v136, %v151
    %v154 = vunpack.c.l.s4 1983009808
    %v155 = vunpack.c.0.s8 %v154
    %v156 = vlaneseq
    %v157 = vshrl.u32 %v156, 7
    %v158 = vsub.s32 %v155, %v157
    %v159 = vrot.slane %v137, %v158
    %v161 = vunpack.c.l.s4 1983009808
    %v162 = vunpack.c.0.s8 %v161
    %v163 = vlaneseq
    %v164 = vshrl.u32 %v163, 7
    %v165 = vsub.s32 %v162, %v164
    %v166 = vrot.slane %v138, %v165
    %v167 = vcombine.low %v145, %v159
    %v168 = vcombine.high %v145, %v159
    %v169 = vcombine.low %v152, %v166
    %v170 = vcombine.high %v152, %v166
    %v179 = vpack.c.bf16 %v167, %v131
    %v180 = vpack.c.bf16 %v168, %v132
    %v181 = vpack.c.bf16 %v169, %v133
    %v182 = vpack.c.bf16 %v170, %v134
    %v183 = vld [vmem:[#allocation5] sm:$0xff]
    %v184 = vld [vmem:[#allocation5 + $0x8] sm:$0xff]
    %v185 = vld [vmem:[#allocation5 + $0x10] sm:$0xff]
    %v186 = vld [vmem:[#allocation5 + $0x18] sm:$0xff]
    %v187 = vld [vmem:[#allocation5 + $0x20] sm:$0xff]
    %v188 = vld [vmem:[#allocation5 + $0x28] sm:$0xff]
    %v189 = vld [vmem:[#allocation5 + $0x30] sm:$0xff]
    %v190 = vld [vmem:[#allocation5 + $0x38] sm:$0xff]
    %v191 = vld [vmem:[#allocation5 + $0x40] sm:$0xff]
    %v192 = vld [vmem:[#allocation5 + $0x48] sm:$0xff]
    %v193 = vld [vmem:[#allocation5 + $0x50] sm:$0xff]
    %v194 = vld [vmem:[#allocation5 + $0x58] sm:$0xff]
    %v195 = vld [vmem:[#allocation5 + $0x60] sm:$0xff]
    %v196 = vld [vmem:[#allocation5 + $0x68] sm:$0xff]
    %v197 = vld [vmem:[#allocation5 + $0x70] sm:$0xff]
    %v198 = vld [vmem:[#allocation5 + $0x78] sm:$0xff]
    %v199 = vld [vmem:[#allocation5 + $0x80] sm:$0xff]
    %v200 = vld [vmem:[#allocation5 + $0x88] sm:$0xff]
    %v201 = vld [vmem:[#allocation5 + $0x90] sm:$0xff]
    %v202 = vld [vmem:[#allocation5 + $0x98] sm:$0xff]
    %v203 = vld [vmem:[#allocation5 + $0xa0] sm:$0xff]
    %v204 = vld [vmem:[#allocation5 + $0xa8] sm:$0xff]
    %v205 = vld [vmem:[#allocation5 + $0xb0] sm:$0xff]
    %v206 = vld [vmem:[#allocation5 + $0xb8] sm:$0xff]
    %v207 = vld [vmem:[#allocation5 + $0xc0] sm:$0xff]
    %v208 = vld [vmem:[#allocation5 + $0xc8] sm:$0xff]
    %v209 = vld [vmem:[#allocation5 + $0xd0] sm:$0xff]
    %v210 = vld [vmem:[#allocation5 + $0xd8] sm:$0xff]
    %v211 = vld [vmem:[#allocation5 + $0xe0] sm:$0xff]
    %v212 = vld [vmem:[#allocation5 + $0xe8] sm:$0xff]
    %v213 = vld [vmem:[#allocation5 + $0xf0] sm:$0xff]
    %v214 = vld [vmem:[#allocation5 + $0xf8] sm:$0xff]
    %v215 = vld [vmem:[#allocation5 + $0x100] sm:$0xff]
    %v216 = vld [vmem:[#allocation5 + $0x108] sm:$0xff]
    %v217 = vld [vmem:[#allocation5 + $0x110] sm:$0xff]
    %v218 = vld [vmem:[#allocation5 + $0x118] sm:$0xff]
    %v219 = vld [vmem:[#allocation5 + $0x120] sm:$0xff]
    %v220 = vld [vmem:[#allocation5 + $0x128] sm:$0xff]
    %v221 = vld [vmem:[#allocation5 + $0x130] sm:$0xff]
    %v222 = vld [vmem:[#allocation5 + $0x138] sm:$0xff]
    %v223 = vld [vmem:[#allocation5 + $0x140] sm:$0xff]
    %v224 = vld [vmem:[#allocation5 + $0x148] sm:$0xff]
    %v225 = vld [vmem:[#allocation5 + $0x150] sm:$0xff]
    %v226 = vld [vmem:[#allocation5 + $0x158] sm:$0xff]
    %v227 = vld [vmem:[#allocation5 + $0x160] sm:$0xff]
    %v228 = vld [vmem:[#allocation5 + $0x168] sm:$0xff]
    %v229 = vld [vmem:[#allocation5 + $0x170] sm:$0xff]
    %v230 = vld [vmem:[#allocation5 + $0x178] sm:$0xff]
    %v231 = vld [vmem:[#allocation5 + $0x180] sm:$0xff]
    %v232 = vld [vmem:[#allocation5 + $0x188] sm:$0xff]
    %v233 = vld [vmem:[#allocation5 + $0x190] sm:$0xff]
    %v234 = vld [vmem:[#allocation5 + $0x198] sm:$0xff]
    %v235 = vld [vmem:[#allocation5 + $0x1a0] sm:$0xff]
    %v236 = vld [vmem:[#allocation5 + $0x1a8] sm:$0xff]
    %v237 = vld [vmem:[#allocation5 + $0x1b0] sm:$0xff]
    %v238 = vld [vmem:[#allocation5 + $0x1b8] sm:$0xff]
    %v239 = vld [vmem:[#allocation5 + $0x1c0] sm:$0xff]
    %v240 = vld [vmem:[#allocation5 + $0x1c8] sm:$0xff]
    %v241 = vld [vmem:[#allocation5 + $0x1d0] sm:$0xff]
    %v242 = vld [vmem:[#allocation5 + $0x1d8] sm:$0xff]
    %v243 = vld [vmem:[#allocation5 + $0x1e0] sm:$0xff]
    %v244 = vld [vmem:[#allocation5 + $0x1e8] sm:$0xff]
    %v245 = vld [vmem:[#allocation5 + $0x1f0] sm:$0xff]
    %v246 = vld [vmem:[#allocation5 + $0x1f8] sm:$0xff]
    %v247 = vld [vmem:[%s2] sm:$0x3]
    %v249 = vlaneseq
    %v250 = vshrl.u32 %v249, 7
    %v251 = vsub.s32 0, %v250
    %v252 = vrot.slane %v247, %v251
    %v253 = vlaneseq
    %v254 = vshrl.u32 %v253, 7
    %v255 = vsub.s32 1, %v254
    %v256 = vrot.slane %v247, %v255
    %v323 = vunpack.c.l.b16 %v183
    %v324 = vunpack.c.h.b16 %v183
    %v325 = vunpack.c.l.b16 %v184
    %v326 = vunpack.c.h.b16 %v184
    %v327 = vunpack.c.l.b16 %v185
    %v328 = vunpack.c.h.b16 %v185
    %v329 = vunpack.c.l.b16 %v186
    %v330 = vunpack.c.h.b16 %v186
    %v331 = vunpack.c.l.b16 %v187
    %v332 = vunpack.c.h.b16 %v187
    %v333 = vunpack.c.l.b16 %v188
    %v334 = vunpack.c.h.b16 %v188
    %v335 = vunpack.c.l.b16 %v189
    %v336 = vunpack.c.h.b16 %v189
    %v337 = vunpack.c.l.b16 %v190
    %v338 = vunpack.c.h.b16 %v190
    %v339 = vunpack.c.l.b16 %v191
    %v340 = vunpack.c.h.b16 %v191
    %v341 = vunpack.c.l.b16 %v192
    %v342 = vunpack.c.h.b16 %v192
    %v343 = vunpack.c.l.b16 %v193
    %v344 = vunpack.c.h.b16 %v193
    %v345 = vunpack.c.l.b16 %v194
    %v346 = vunpack.c.h.b16 %v194
    %v347 = vunpack.c.l.b16 %v195
    %v348 = vunpack.c.h.b16 %v195
    %v349 = vunpack.c.l.b16 %v196
    %v350 = vunpack.c.h.b16 %v196
    %v351 = vunpack.c.l.b16 %v197
    %v352 = vunpack.c.h.b16 %v197
    %v353 = vunpack.c.l.b16 %v198
    %v354 = vunpack.c.h.b16 %v198
    %v355 = vunpack.c.l.b16 %v199
    %v356 = vunpack.c.h.b16 %v199
    %v357 = vunpack.c.l.b16 %v200
    %v358 = vunpack.c.h.b16 %v200
    %v359 = vunpack.c.l.b16 %v201
    %v360 = vunpack.c.h.b16 %v201
    %v361 = vunpack.c.l.b16 %v202
    %v362 = vunpack.c.h.b16 %v202
    %v363 = vunpack.c.l.b16 %v203
    %v364 = vunpack.c.h.b16 %v203
    %v365 = vunpack.c.l.b16 %v204
    %v366 = vunpack.c.h.b16 %v204
    %v367 = vunpack.c.l.b16 %v205
    %v368 = vunpack.c.h.b16 %v205
    %v369 = vunpack.c.l.b16 %v206
    %v370 = vunpack.c.h.b16 %v206
    %v371 = vunpack.c.l.b16 %v207
    %v372 = vunpack.c.h.b16 %v207
    %v373 = vunpack.c.l.b16 %v208
    %v374 = vunpack.c.h.b16 %v208
    %v375 = vunpack.c.l.b16 %v209
    %v376 = vunpack.c.h.b16 %v209
    %v377 = vunpack.c.l.b16 %v210
    %v378 = vunpack.c.h.b16 %v210
    %v379 = vunpack.c.l.b16 %v211
    %v380 = vunpack.c.h.b16 %v211
    %v381 = vunpack.c.l.b16 %v212
    %v382 = vunpack.c.h.b16 %v212
    %v383 = vunpack.c.l.b16 %v213
    %v384 = vunpack.c.h.b16 %v213
    %v385 = vunpack.c.l.b16 %v214
    %v386 = vunpack.c.h.b16 %v214
    %v387 = vunpack.c.l.b16 %v215
    %v388 = vunpack.c.h.b16 %v215
    %v389 = vunpack.c.l.b16 %v216
    %v390 = vunpack.c.h.b16 %v216
    %v391 = vunpack.c.l.b16 %v217
    %v392 = vunpack.c.h.b16 %v217
    %v393 = vunpack.c.l.b16 %v218
    %v394 = vunpack.c.h.b16 %v218
    %v395 = vunpack.c.l.b16 %v219
    %v396 = vunpack.c.h.b16 %v219
    %v397 = vunpack.c.l.b16 %v220
    %v398 = vunpack.c.h.b16 %v220
    %v399 = vunpack.c.l.b16 %v221
    %v400 = vunpack.c.h.b16 %v221
    %v401 = vunpack.c.l.b16 %v222
    %v402 = vunpack.c.h.b16 %v222
    %v403 = vunpack.c.l.b16 %v223
    %v404 = vunpack.c.h.b16 %v223
    %v405 = vunpack.c.l.b16 %v224
    %v406 = vunpack.c.h.b16 %v224
    %v407 = vunpack.c.l.b16 %v225
    %v408 = vunpack.c.h.b16 %v225
    %v409 = vunpack.c.l.b16 %v226
    %v410 = vunpack.c.h.b16 %v226
    %v411 = vunpack.c.l.b16 %v227
    %v412 = vunpack.c.h.b16 %v227
    %v413 = vunpack.c.l.b16 %v228
    %v414 = vunpack.c.h.b16 %v228
    %v415 = vunpack.c.l.b16 %v229
    %v416 = vunpack.c.h.b16 %v229
    %v417 = vunpack.c.l.b16 %v230
    %v418 = vunpack.c.h.b16 %v230
    %v419 = vunpack.c.l.b16 %v231
    %v420 = vunpack.c.h.b16 %v231
    %v421 = vunpack.c.l.b16 %v232
    %v422 = vunpack.c.h.b16 %v232
    %v423 = vunpack.c.l.b16 %v233
    %v424 = vunpack.c.h.b16 %v233
    %v425 = vunpack.c.l.b16 %v234
    %v426 = vunpack.c.h.b16 %v234
    %v427 = vunpack.c.l.b16 %v235
    %v428 = vunpack.c.h.b16 %v235
    %v429 = vunpack.c.l.b16 %v236
    %v430 = vunpack.c.h.b16 %v236
    %v431 = vunpack.c.l.b16 %v237
    %v432 = vunpack.c.h.b16 %v237
    %v433 = vunpack.c.l.b16 %v238
    %v434 = vunpack.c.h.b16 %v238
    %v435 = vunpack.c.l.b16 %v239
    %v436 = vunpack.c.h.b16 %v239
    %v437 = vunpack.c.l.b16 %v240
    %v438 = vunpack.c.h.b16 %v240
    %v439 = vunpack.c.l.b16 %v241
    %v440 = vunpack.c.h.b16 %v241
    %v441 = vunpack.c.l.b16 %v242
    %v442 = vunpack.c.h.b16 %v242
    %v443 = vunpack.c.l.b16 %v243
    %v444 = vunpack.c.h.b16 %v243
    %v445 = vunpack.c.l.b16 %v244
    %v446 = vunpack.c.h.b16 %v244
    %v447 = vunpack.c.l.b16 %v245
    %v448 = vunpack.c.h.b16 %v245
    %v449 = vunpack.c.l.b16 %v246
    %v450 = vunpack.c.h.b16 %v246
    %v451 = vpack.c.b16 %v325, %v323
    %v452 = vpack.c.b16 %v326, %v324
    %v453 = vpack.c.b16 %v329, %v327
    %v454 = vpack.c.b16 %v330, %v328
    %v455 = vpack.c.b16 %v333, %v331
    %v456 = vpack.c.b16 %v334, %v332
    %v457 = vpack.c.b16 %v337, %v335
    %v458 = vpack.c.b16 %v338, %v336
    %v459 = vpack.c.b16 %v341, %v339
    %v460 = vpack.c.b16 %v342, %v340
    %v461 = vpack.c.b16 %v345, %v343
    %v462 = vpack.c.b16 %v346, %v344
    %v463 = vpack.c.b16 %v349, %v347
    %v464 = vpack.c.b16 %v350, %v348
    %v465 = vpack.c.b16 %v353, %v351
    %v466 = vpack.c.b16 %v354, %v352
    %v467 = vpack.c.b16 %v357, %v355
    %v468 = vpack.c.b16 %v358, %v356
    %v469 = vpack.c.b16 %v361, %v359
    %v470 = vpack.c.b16 %v362, %v360
    %v471 = vpack.c.b16 %v365, %v363
    %v472 = vpack.c.b16 %v366, %v364
    %v473 = vpack.c.b16 %v369, %v367
    %v474 = vpack.c.b16 %v370, %v368
    %v475 = vpack.c.b16 %v373, %v371
    %v476 = vpack.c.b16 %v374, %v372
    %v477 = vpack.c.b16 %v377, %v375
    %v478 = vpack.c.b16 %v378, %v376
    %v479 = vpack.c.b16 %v381, %v379
    %v480 = vpack.c.b16 %v382, %v380
    %v481 = vpack.c.b16 %v385, %v383
    %v482 = vpack.c.b16 %v386, %v384
    %v483 = vpack.c.b16 %v389, %v387
    %v484 = vpack.c.b16 %v390, %v388
    %v485 = vpack.c.b16 %v393, %v391
    %v486 = vpack.c.b16 %v394, %v392
    %v487 = vpack.c.b16 %v397, %v395
    %v488 = vpack.c.b16 %v398, %v396
    %v489 = vpack.c.b16 %v401, %v399
    %v490 = vpack.c.b16 %v402, %v400
    %v491 = vpack.c.b16 %v405, %v403
    %v492 = vpack.c.b16 %v406, %v404
    %v493 = vpack.c.b16 %v409, %v407
    %v494 = vpack.c.b16 %v410, %v408
    %v495 = vpack.c.b16 %v413, %v411
    %v496 = vpack.c.b16 %v414, %v412
    %v497 = vpack.c.b16 %v417, %v415
    %v498 = vpack.c.b16 %v418, %v416
    %v499 = vpack.c.b16 %v421, %v419
    %v500 = vpack.c.b16 %v422, %v420
    %v501 = vpack.c.b16 %v425, %v423
    %v502 = vpack.c.b16 %v426, %v424
    %v503 = vpack.c.b16 %v429, %v427
    %v504 = vpack.c.b16 %v430, %v428
    %v505 = vpack.c.b16 %v433, %v431
    %v506 = vpack.c.b16 %v434, %v432
    %v507 = vpack.c.b16 %v437, %v435
    %v508 = vpack.c.b16 %v438, %v436
    %v509 = vpack.c.b16 %v441, %v439
    %v510 = vpack.c.b16 %v442, %v440
    %v511 = vpack.c.b16 %v445, %v443
    %v512 = vpack.c.b16 %v446, %v444
    %v513 = vpack.c.b16 %v449, %v447
    %v514 = vpack.c.b16 %v450, %v448
    %579 = vmatprep.subr.bf16.mxu0 %v452
    %580 = vmatpush1.bf16.msra.mxu0 %v451
    %581 = vmatprep.subr.bf16.mxu0 %v454
    %582 = vmatpush1.bf16.msra.mxu0 %v453
    %583 = vmatprep.subr.bf16.mxu0 %v456
    %584 = vmatpush1.bf16.msra.mxu0 %v455
    %585 = vmatprep.subr.bf16.mxu0 %v458
    %586 = vmatpush1.bf16.msra.mxu0 %v457
    %587 = vmatprep.subr.bf16.mxu0 %v460
    %588 = vmatpush1.bf16.msra.mxu0 %v459
    %589 = vmatprep.subr.bf16.mxu0 %v462
    %590 = vmatpush1.bf16.msra.mxu0 %v461
    %591 = vmatprep.subr.bf16.mxu0 %v464
    %592 = vmatpush1.bf16.msra.mxu0 %v463
    %593 = vmatprep.subr.bf16.mxu0 %v466
    %594 = vmatpush1.bf16.msra.mxu0 %v465
    %595 = vmatprep.subr.bf16.mxu0 %v468
    %596 = vmatpush1.bf16.msra.mxu0 %v467
    %597 = vmatprep.subr.bf16.mxu0 %v470
    %598 = vmatpush1.bf16.msra.mxu0 %v469
    %599 = vmatprep.subr.bf16.mxu0 %v472
    %600 = vmatpush1.bf16.msra.mxu0 %v471
    %601 = vmatprep.subr.bf16.mxu0 %v474
    %602 = vmatpush1.bf16.msra.mxu0 %v473
    %603 = vmatprep.subr.bf16.mxu0 %v476
    %604 = vmatpush1.bf16.msra.mxu0 %v475
    %605 = vmatprep.subr.bf16.mxu0 %v478
    %606 = vmatpush1.bf16.msra.mxu0 %v477
    %607 = vmatprep.subr.bf16.mxu0 %v480
    %608 = vmatpush1.bf16.msra.mxu0 %v479
    %609 = vmatprep.subr.bf16.mxu0 %v482
    %610 = vmatpush1.bf16.msra.mxu0 %v481
    %611 = vmatprep.mubr.bf16.mxu0 %v180
    %612 = vmatmul.mubr.bf16.gmra.mrb[0].mxu0 %v179
    %v613 = vpop.f32.mrb[0].mxu0
    %v614 = vadd.f32 %v252, %v613
    %v615 = vpop.f32.mrb[0].mxu0
    %v616 = vadd.f32 %v256, %v615
    %v617 = vpop.f32.mrb[0].mxu0
    %v618 = vadd.f32 %v252, %v617
    %v619 = vpop.f32.mrb[0].mxu0
    %v620 = vadd.f32 %v256, %v619
    %621 = vdwg.mxu0
    %622 = vmatprep.subr.bf16.mxu0 %v484
    %623 = vmatpush1.bf16.msra.mxu0 %v483
    %624 = vmatprep.subr.bf16.mxu0 %v486
    %625 = vmatpush1.bf16.msra.mxu0 %v485
    %626 = vmatprep.subr.bf16.mxu0 %v488
    %627 = vmatpush1.bf16.msra.mxu0 %v487
    %628 = vmatprep.subr.bf16.mxu0 %v490
    %629 = vmatpush1.bf16.msra.mxu0 %v489
    %630 = vmatprep.subr.bf16.mxu0 %v492
    %631 = vmatpush1.bf16.msra.mxu0 %v491
    %632 = vmatprep.subr.bf16.mxu0 %v494
    %633 = vmatpush1.bf16.msra.mxu0 %v493
    %634 = vmatprep.subr.bf16.mxu0 %v496
    %635 = vmatpush1.bf16.msra.mxu0 %v495
    %636 = vmatprep.subr.bf16.mxu0 %v498
    %637 = vmatpush1.bf16.msra.mxu0 %v497
    %638 = vmatprep.subr.bf16.mxu0 %v500
    %639 = vmatpush1.bf16.msra.mxu0 %v499
    %640 = vmatprep.subr.bf16.mxu0 %v502
    %641 = vmatpush1.bf16.msra.mxu0 %v501
    %642 = vmatprep.subr.bf16.mxu0 %v504
    %643 = vmatpush1.bf16.msra.mxu0 %v503
    %644 = vmatprep.subr.bf16.mxu0 %v506
    %645 = vmatpush1.bf16.msra.mxu0 %v505
    %646 = vmatprep.subr.bf16.mxu0 %v508
    %647 = vmatpush1.bf16.msra.mxu0 %v507
    %648 = vmatprep.subr.bf16.mxu0 %v510
    %649 = vmatpush1.bf16.msra.mxu0 %v509
    %650 = vmatprep.subr.bf16.mxu0 %v512
    %651 = vmatpush1.bf16.msra.mxu0 %v511
    %652 = vmatprep.subr.bf16.mxu0 %v514
    %653 = vmatpush1.bf16.msra.mxu0 %v513
    %654 = vmatprep.mubr.bf16.mxu0 %v182
    %655 = vmatmul.mubr.bf16.gmra.mrb[0].mxu0 %v181
    %v656 = vpop.f32.mrb[0].mxu0
    %v657 = vadd.f32 %v614, %v656
    %v658 = vpop.f32.mrb[0].mxu0
    %v659 = vadd.f32 %v616, %v658
    %v660 = vpop.f32.mrb[0].mxu0
    %v661 = vadd.f32 %v618, %v660
    %v662 = vpop.f32.mrb[0].mxu0
    %v663 = vadd.f32 %v620, %v662
    %664 = vdwg.mxu0
    %v665 = vmax.f32 %v657, 0.0
    %v666 = vmax.f32 %v659, 0.0
    %v667 = vmax.f32 %v661, 0.0
    %v668 = vmax.f32 %v663, 0.0
    %v669 = vpack.c.bf16 %v667, %v665
    %v670 = vpack.c.bf16 %v668, %v666
    %v671 = vld [vmem:[#allocation7] sm:$0xf]
    %v672 = vld [vmem:[#allocation7 + $0x4] sm:$0xf]
    %v673 = vld [vmem:[#allocation7 + $0x8] sm:$0xf]
    %v674 = vld [vmem:[#allocation7 + $0xc] sm:$0xf]
    %v675 = vld [vmem:[#allocation7 + $0x10] sm:$0xf]
    %v676 = vld [vmem:[#allocation7 + $0x14] sm:$0xf]
    %v677 = vld [vmem:[#allocation7 + $0x18] sm:$0xf]
    %v678 = vld [vmem:[#allocation7 + $0x1c] sm:$0xf]
    %v679 = vld [vmem:[#allocation7 + $0x20] sm:$0xf]
    %v680 = vld [vmem:[#allocation7 + $0x24] sm:$0xf]
    %v681 = vld [vmem:[#allocation7 + $0x28] sm:$0xf]
    %v682 = vld [vmem:[#allocation7 + $0x2c] sm:$0xf]
    %v683 = vld [vmem:[#allocation7 + $0x30] sm:$0xf]
    %v684 = vld [vmem:[#allocation7 + $0x34] sm:$0xf]
    %v685 = vld [vmem:[#allocation7 + $0x38] sm:$0xf]
    %v686 = vld [vmem:[#allocation7 + $0x3c] sm:$0xf]
    %v687 = vld [vmem:[#allocation7 + $0x40] sm:$0xf]
    %v688 = vld [vmem:[#allocation7 + $0x44] sm:$0xf]
    %v689 = vld [vmem:[#allocation7 + $0x48] sm:$0xf]
    %v690 = vld [vmem:[#allocation7 + $0x4c] sm:$0xf]
    %v691 = vld [vmem:[#allocation7 + $0x50] sm:$0xf]
    %v692 = vld [vmem:[#allocation7 + $0x54] sm:$0xf]
    %v693 = vld [vmem:[#allocation7 + $0x58] sm:$0xf]
    %v694 = vld [vmem:[#allocation7 + $0x5c] sm:$0xf]
    %v695 = vld [vmem:[#allocation7 + $0x60] sm:$0xf]
    %v696 = vld [vmem:[#allocation7 + $0x64] sm:$0xf]
    %v697 = vld [vmem:[#allocation7 + $0x68] sm:$0xf]
    %v698 = vld [vmem:[#allocation7 + $0x6c] sm:$0xf]
    %v699 = vld [vmem:[#allocation7 + $0x70] sm:$0xf]
    %v700 = vld [vmem:[#allocation7 + $0x74] sm:$0xf]
    %v701 = vld [vmem:[#allocation7 + $0x78] sm:$0xf]
    %v702 = vld [vmem:[#allocation7 + $0x7c] sm:$0xf]
    %v703 = vld [vmem:[%s4] sm:$0x1]
    %v705 = vlaneseq
    %v706 = vshrl.u32 %v705, 7
    %v707 = vsub.s32 0, %v706
    %v708 = vrot.slane %v703, %v707
    %v742 = vunpack.c.l.b16 %v671
    %v743 = vunpack.c.l.b16 %v672
    %v744 = vunpack.c.l.b16 %v673
    %v745 = vunpack.c.l.b16 %v674
    %v746 = vunpack.c.l.b16 %v675
    %v747 = vunpack.c.l.b16 %v676
    %v748 = vunpack.c.l.b16 %v677
    %v749 = vunpack.c.l.b16 %v678
    %v750 = vunpack.c.l.b16 %v679
    %v751 = vunpack.c.l.b16 %v680
    %v752 = vunpack.c.l.b16 %v681
    %v753 = vunpack.c.l.b16 %v682
    %v754 = vunpack.c.l.b16 %v683
    %v755 = vunpack.c.l.b16 %v684
    %v756 = vunpack.c.l.b16 %v685
    %v757 = vunpack.c.l.b16 %v686
    %v758 = vunpack.c.l.b16 %v687
    %v759 = vunpack.c.l.b16 %v688
    %v760 = vunpack.c.l.b16 %v689
    %v761 = vunpack.c.l.b16 %v690
    %v762 = vunpack.c.l.b16 %v691
    %v763 = vunpack.c.l.b16 %v692
    %v764 = vunpack.c.l.b16 %v693
    %v765 = vunpack.c.l.b16 %v694
    %v766 = vunpack.c.l.b16 %v695
    %v767 = vunpack.c.l.b16 %v696
    %v768 = vunpack.c.l.b16 %v697
    %v769 = vunpack.c.l.b16 %v698
    %v770 = vunpack.c.l.b16 %v699
    %v771 = vunpack.c.l.b16 %v700
    %v772 = vunpack.c.l.b16 %v701
    %v773 = vunpack.c.l.b16 %v702
    %v774 = vpack.c.b16 %v743, %v742
    %v775 = vpack.c.b16 %v745, %v744
    %v776 = vpack.c.b16 %v747, %v746
    %v777 = vpack.c.b16 %v749, %v748
    %v778 = vpack.c.b16 %v751, %v750
    %v779 = vpack.c.b16 %v753, %v752
    %v780 = vpack.c.b16 %v755, %v754
    %v781 = vpack.c.b16 %v757, %v756
    %v782 = vpack.c.b16 %v759, %v758
    %v783 = vpack.c.b16 %v761, %v760
    %v784 = vpack.c.b16 %v763, %v762
    %v785 = vpack.c.b16 %v765, %v764
    %v786 = vpack.c.b16 %v767, %v766
    %v787 = vpack.c.b16 %v769, %v768
    %v788 = vpack.c.b16 %v771, %v770
    %v789 = vpack.c.b16 %v773, %v772
    %806 = vmatprep.subr.bf16.mxu0 0
    %807 = vmatpush1.bf16.msra.mxu0 %v774
    %808 = vmatprep.subr.bf16.mxu0 0
    %809 = vmatpush1.bf16.msra.mxu0 %v775
    %810 = vmatprep.subr.bf16.mxu0 0
    %811 = vmatpush1.bf16.msra.mxu0 %v776
    %812 = vmatprep.subr.bf16.mxu0 0
    %813 = vmatpush1.bf16.msra.mxu0 %v777
    %814 = vmatprep.subr.bf16.mxu0 0
    %815 = vmatpush1.bf16.msra.mxu0 %v778
    %816 = vmatprep.subr.bf16.mxu0 0
    %817 = vmatpush1.bf16.msra.mxu0 %v779
    %818 = vmatprep.subr.bf16.mxu0 0
    %819 = vmatpush1.bf16.msra.mxu0 %v780
    %820 = vmatprep.subr.bf16.mxu0 0
    %821 = vmatpush1.bf16.msra.mxu0 %v781
    %822 = vmatprep.subr.bf16.mxu0 0
    %823 = vmatpush1.bf16.msra.mxu0 %v782
    %824 = vmatprep.subr.bf16.mxu0 0
    %825 = vmatpush1.bf16.msra.mxu0 %v783
    %826 = vmatprep.subr.bf16.mxu0 0
    %827 = vmatpush1.bf16.msra.mxu0 %v784
    %828 = vmatprep.subr.bf16.mxu0 0
    %829 = vmatpush1.bf16.msra.mxu0 %v785
    %830 = vmatprep.subr.bf16.mxu0 0
    %831 = vmatpush1.bf16.msra.mxu0 %v786
    %832 = vmatprep.subr.bf16.mxu0 0
    %833 = vmatpush1.bf16.msra.mxu0 %v787
    %834 = vmatprep.subr.bf16.mxu0 0
    %835 = vmatpush1.bf16.msra.mxu0 %v788
    %836 = vmatprep.subr.bf16.mxu0 0
    %837 = vmatpush1.bf16.msra.mxu0 %v789
    %838 = vmatprep.mubr.bf16.mxu0 %v670
    %839 = vmatmul.mubr.bf16.gmra.mrb[0].mxu0 %v669
    %v840 = vpop.f32.mrb[0].mxu0
    %v841 = vadd.f32 %v708, %v840
    %v842 = vpop.f32.mrb[0].mxu0
    %v843 = vpop.f32.mrb[0].mxu0
    %v844 = vadd.f32 %v708, %v843
    %v845 = vpop.f32.mrb[0].mxu0
    %846 = vdwg.mxu0
    %v847 = vmax.f32 %v841, 0.0
    %v848 = vmax.f32 %v844, 0.0
    %v849 = vpack.c.bf16 %v848, %v847
    %v850 = vld [vmem:[#allocation8] sm:$0xf]
    %v851 = vld [vmem:[#allocation8 + $0x4] sm:$0xf]
    %v852 = vld [vmem:[#allocation8 + $0x8] sm:$0xf]
    %v853 = vld [vmem:[#allocation8 + $0xc] sm:$0xf]
    %v854 = vld [vmem:[#allocation8 + $0x10] sm:$0xf]
    %v855 = vld [vmem:[#allocation8 + $0x14] sm:$0xf]
    %v856 = vld [vmem:[#allocation8 + $0x18] sm:$0xf]
    %v857 = vld [vmem:[#allocation8 + $0x1c] sm:$0xf]
    %v858 = vld [vmem:[#allocation8 + $0x20] sm:$0xf]
    %v859 = vld [vmem:[#allocation8 + $0x24] sm:$0xf]
    %v860 = vld [vmem:[#allocation8 + $0x28] sm:$0xf]
    %v861 = vld [vmem:[#allocation8 + $0x2c] sm:$0xf]
    %v862 = vld [vmem:[#allocation8 + $0x30] sm:$0xf]
    %v863 = vld [vmem:[#allocation8 + $0x34] sm:$0xf]
    %v864 = vld [vmem:[#allocation8 + $0x38] sm:$0xf]
    %v865 = vld [vmem:[#allocation8 + $0x3c] sm:$0xf]
    %v866 = vld [vmem:[%s6] sm:$0x1]
    %v868 = vlaneseq
    %v869 = vshrl.u32 %v868, 7
    %v870 = vsub.s32 0, %v869
    %v871 = vrot.slane %v866, %v870
    %v889 = vunpack.c.l.b16 %v850
    %v890 = vunpack.c.l.b16 %v851
    %v891 = vunpack.c.l.b16 %v852
    %v892 = vunpack.c.l.b16 %v853
    %v893 = vunpack.c.l.b16 %v854
    %v894 = vunpack.c.l.b16 %v855
    %v895 = vunpack.c.l.b16 %v856
    %v896 = vunpack.c.l.b16 %v857
    %v897 = vunpack.c.l.b16 %v858
    %v898 = vunpack.c.l.b16 %v859
    %v899 = vunpack.c.l.b16 %v860
    %v900 = vunpack.c.l.b16 %v861
    %v901 = vunpack.c.l.b16 %v862
    %v902 = vunpack.c.l.b16 %v863
    %v903 = vunpack.c.l.b16 %v864
    %v904 = vunpack.c.l.b16 %v865
    %v905 = vpack.c.b16 %v890, %v889
    %v906 = vpack.c.b16 %v892, %v891
    %v907 = vpack.c.b16 %v894, %v893
    %v908 = vpack.c.b16 %v896, %v895
    %v909 = vpack.c.b16 %v898, %v897
    %v910 = vpack.c.b16 %v900, %v899
    %v911 = vpack.c.b16 %v902, %v901
    %v912 = vpack.c.b16 %v904, %v903
    %921 = vmatprep.subr.bf16.mxu0 0
    %922 = vmatpush1.bf16.msra.mxu0 %v905
    %923 = vmatprep.subr.bf16.mxu0 0
    %924 = vmatpush1.bf16.msra.mxu0 %v906
    %925 = vmatprep.subr.bf16.mxu0 0
    %926 = vmatpush1.bf16.msra.mxu0 %v907
    %927 = vmatprep.subr.bf16.mxu0 0
    %928 = vmatpush1.bf16.msra.mxu0 %v908
    %929 = vmatprep.subr.bf16.mxu0 0
    %930 = vmatpush1.bf16.msra.mxu0 %v909
    %931 = vmatprep.subr.bf16.mxu0 0
    %932 = vmatpush1.bf16.msra.mxu0 %v910
    %933 = vmatprep.subr.bf16.mxu0 0
    %934 = vmatpush1.bf16.msra.mxu0 %v911
    %935 = vmatprep.subr.bf16.mxu0 0
    %936 = vmatpush1.bf16.msra.mxu0 %v912
    %937 = vmatprep.subr.bf16.mxu0 0
    %938 = vmatpush1.bf16.msra.mxu0 0
    %939 = vmatprep.subr.bf16.mxu0 0
    %940 = vmatpush1.bf16.msra.mxu0 0
    %941 = vmatprep.subr.bf16.mxu0 0
    %942 = vmatpush1.bf16.msra.mxu0 0
    %943 = vmatprep.subr.bf16.mxu0 0
    %944 = vmatpush1.bf16.msra.mxu0 0
    %945 = vmatprep.subr.bf16.mxu0 0
    %946 = vmatpush1.bf16.msra.mxu0 0
    %947 = vmatprep.subr.bf16.mxu0 0
    %948 = vmatpush1.bf16.msra.mxu0 0
    %949 = vmatprep.subr.bf16.mxu0 0
    %950 = vmatpush1.bf16.msra.mxu0 0
    %951 = vmatprep.subr.bf16.mxu0 0
    %952 = vmatpush1.bf16.msra.mxu0 0
    %953 = vmatprep.mubr.bf16.mxu0 0
    %954 = vmatmul.mubr.bf16.gmra.mrb[0].mxu0 %v849
    %v955 = vpop.f32.mrb[0].mxu0
    %v956 = vadd.f32 %v871, %v955
    %v957 = vpop.f32.mrb[0].mxu0
    %v958 = vpop.f32.mrb[0].mxu0
    %v959 = vadd.f32 %v871, %v958
    %v960 = vpop.f32.mrb[0].mxu0
    %961 = vdwg.mxu0
    %vm962 = vcmask 31744
    %963 = vst.msk [vmem:[#allocation10] sm:$0xff] %vm962, %v956
    %964 = vst.msk [vmem:[#allocation10 + $0x8] sm:$0xff] %vm962, %v959
    // Predicated region
    $region46: #{regression_head_pallas.1} parent=1 // pred_check
      _
    $region47: #{regression_head_pallas.1} parent=1 // pred_check_branch
      %966 = sbr.rel (0) target = $region49
    $region48: #{regression_head_pallas.1} parent=1 // pred_region
      %s968 = ssub.s32 256, 32
      %969 = vsyncadd [#allocation4], %s968
      %s970 = sshll.u32 [#allocation10], 4
      %s971 = int_to_ptr.vmem [resolvable:$true] %s970
      %976 = dma.vmem_to_hbm [thread:$0]  %s971, 32, %s7, [#allocation4], 32, 32, 2
    $region49: #{regression_head_pallas.1} parent=1 // pred_fallthru
      _
    // Predicated region
    $region50: #{regression_head_pallas.1} parent=1 // pred_check
      _
    $region51: #{regression_head_pallas.1} parent=1 // pred_check_branch
      %978 = sbr.rel (0) target = $region53
    $region52: #{regression_head_pallas.1} parent=1 // pred_region
      %979 = dma.done [#allocation4], 256
    $region53: #{regression_head_pallas.1} parent=1 // pred_fallthru
      _
    %980 = vsyncpa [#allocation3], 1
    %981 = vsyncpa [#allocation6], 1
    %982 = vsyncpa [#allocation9], 1
    %983 = vsyncpa [#allocation4], 1

</llo_original>
